<compile_context>
chip_gen: v5e
topology: v5e:2x2
jax: 0.10.0
libtpu: 0.0.40
codegen_flags: <defaults>
</compile_context>

<pallas_src>
import jax
import jax.numpy as jnp
from jax.experimental import pallas as pl
from jax.experimental.pallas import tpu as pltpu


def lstm_last_hidden_kernel(x_ref, slab_ref, out_ref):
    """LSTM layer-0 recurrence over time + final Linear, all resident in VMEM.

    x_ref    : (B*T, F)  batch-major input, row index = b*T + t (plain reshape
                         of the (B,T,F) batch_first input -- no transpose)
    slab_ref : (F+H+3, 4H) packed parameters:
                 rows [0, F)        : W_ih^T           (g-gate cols pre-scaled x2)
                 rows [F, F+H)      : W_hh^T           (g-gate cols pre-scaled x2)
                 row  F+H           : b_ih + b_hh      (g-gate cols pre-scaled x2)
                 row  F+H+1         : linear weight in lanes [0, H)
                 row  F+H+2         : linear bias in lane 0
    out_ref  : (B, 1)    linear(h_T)
    """
    B = out_ref.shape[0]
    BT, F = x_ref.shape
    T = BT // B
    H = slab_ref.shape[1] // 4

    # Static slab slices (single DMA'd operand; views are cheap loads).
    wih = slab_ref[0:F, :]                          # (F, 4H)
    whh = slab_ref[F:F + H, :]                      # (H, 4H), hoisted once
    bias = slab_ref[F + H:F + H + 1, :]             # (1, 4H)
    wlin = slab_ref[F + H + 1:F + H + 2, 0:H]       # (1, H)
    blin = slab_ref[F + H + 2:F + H + 3, 0:1]       # (1, 1)

    # Hoisted input projection: one MXU matmul (bias folded in), entirely off
    # the serial recurrence chain.  Row order is b*T + t.
    gates_x = (jnp.dot(x_ref[...], wih, preferred_element_type=jnp.float32)
               + bias)                              # (B*T, 4H)

    # Recurrent state lives in vregs, not VMEM scratch.
    h = jnp.zeros((B, H), jnp.float32)
    c = jnp.zeros((B, H), jnp.float32)

    # T is static and small -> fully unrolled loop so the scheduler can
    # interleave MXU push/drain, EUP and VPU work of adjacent steps.
    for t in range(T):
        # Gather this step's per-batch rows (b*T + t).  Static slices; they
        # depend only on gates_x, so they can be computed ahead of the chain.
        gx = jnp.concatenate(
            [gates_x[b * T + t:b * T + t + 1, :] for b in range(B)], axis=0)

        gates = gx + jnp.dot(h, whh, preferred_element_type=jnp.float32)

        # Single whole-vreg sigmoid (one EUP push for all four gate blocks);
        # g-gate columns were pre-scaled by 2, so tanh(x) = 2*sigmoid(2x) - 1
        # is recovered with a VPU FMA instead of a second EUP push.
        sig = jax.nn.sigmoid(gates)
        i = sig[:, 0 * H:1 * H]
        f = sig[:, 1 * H:2 * H]
        g = 2.0 * sig[:, 2 * H:3 * H] - 1.0
        o = sig[:, 3 * H:4 * H]

        c = f * c + i * g
        h = o * jnp.tanh(c)

    # Final Linear(H -> 1): VPU multiply + XLU lane-reduce.
    out_ref[...] = (jnp.sum(h * wlin, axis=-1, keepdims=True) + blin)


def prepare_params(params):
    """One-time parameter packing into a single (F+H+3, 4H) f32 slab."""
    H = params["w_hh"].shape[1]
    F = params["w_ih"].shape[1]

    wih_t = params["w_ih"].T.astype(jnp.float32)                     # (F, 4H)
    whh_t = params["w_hh"].T.astype(jnp.float32)                     # (H, 4H)
    bias = (params["b_ih"] + params["b_hh"]).reshape(1, 4 * H).astype(jnp.float32)

    # Pre-scale the g-gate columns (block [2H, 3H)) by 2 so the kernel can use
    # tanh(x) = 2*sigmoid(2x) - 1 and skip the tanh(gates) EUP push.
    gscale = jnp.ones((1, 4 * H), jnp.float32).at[:, 2 * H:3 * H].set(2.0)
    wih_t = wih_t * gscale
    whh_t = whh_t * gscale
    bias = bias * gscale

    wlin_row = jnp.zeros((1, 4 * H), jnp.float32).at[:, :H].set(
        params["w_lin"].reshape(1, H).astype(jnp.float32))
    blin_row = jnp.zeros((1, 4 * H), jnp.float32).at[:, :1].set(
        params["b_lin"].reshape(1, 1).astype(jnp.float32))

    # (F + H + 3, 4H) -- one DMA for all parameters.
    return jnp.concatenate([wih_t, whh_t, bias, wlin_row, blin_row], axis=0)


@jax.jit
def shallow_lstm_forward(x, slab):
    """x: (B, T, F) float32, batch_first like the PyTorch module."""
    B, T, F = x.shape

    # Row-major reshape only (NO transpose HLO): row index = b*T + t; the
    # kernel does the per-step row gather internally.
    x2d = x.reshape(B * T, F).astype(jnp.float32)

    vmem = pl.BlockSpec(memory_space=pltpu.MemorySpace.VMEM)
    out = pl.pallas_call(
        lstm_last_hidden_kernel,
        out_shape=jax.ShapeDtypeStruct((B, 1), jnp.float32),
        in_specs=[vmem, vmem],
        out_specs=vmem,
    )(x2d, slab)

    return out.reshape(-1)  # .flatten() -> (B,)


def init_params(key, feature_size, hidden_units):
    """Deterministic init mimicking PyTorch's U(-1/sqrt(H), 1/sqrt(H))."""
    H, F = hidden_units, feature_size
    k = 1.0 / jnp.sqrt(jnp.float32(H))
    keys = jax.random.split(key, 6)
    return {
        "w_ih": jax.random.uniform(keys[0], (4 * H, F), jnp.float32, -k, k),
        "w_hh": jax.random.uniform(keys[1], (4 * H, H), jnp.float32, -k, k),
        "b_ih": jax.random.uniform(keys[2], (4 * H,), jnp.float32, -k, k),
        "b_hh": jax.random.uniform(keys[3], (4 * H,), jnp.float32, -k, k),
        "w_lin": jax.random.uniform(keys[4], (1, H), jnp.float32, -k, k),
        "b_lin": jax.random.uniform(keys[5], (1,), jnp.float32, -k, k),
    }


if __name__ == "__main__":
    # model_params = {'model_hidden_units': 32, 'model_num_layers': 2,
    #                 'model_dropout': 0.1}  (layers > 1 / dropout cannot
    #                 affect the output since only hn[0] is used)
    batch, seq, feature_size, hidden_units = 2, 8, 16, 32

    key = jax.random.PRNGKey(0)
    kx, kp = jax.random.split(key)
    x = jax.random.normal(kx, (batch, seq, feature_size), jnp.float32)
    params = init_params(kp, feature_size, hidden_units)
    slab = prepare_params(params)

    out = shallow_lstm_forward(x, slab)
    out = jax.block_until_ready(out)
    assert out.shape == (batch,), out.shape

    # Pure-JAX reference of the recurrence + final linear (exact PyTorch
    # formulation with tanh; the kernel's 2*sigmoid(2x)-1 rewrite shifts
    # rounding by a few ULPs, hence the slightly relaxed 2e-5 tolerance).
    def ref_forward(x, p):
        B = x.shape[0]
        H = p["w_hh"].shape[1]
        h = jnp.zeros((B, H), jnp.float32)
        c = jnp.zeros((B, H), jnp.float32)
        for t in range(x.shape[1]):
            g = x[:, t, :] @ p["w_ih"].T + p["b_ih"] + h @ p["w_hh"].T + p["b_hh"]
            i, f, gg, o = jnp.split(g, 4, axis=-1)
            c = jax.nn.sigmoid(f) * c + jax.nn.sigmoid(i) * jnp.tanh(gg)
            h = jax.nn.sigmoid(o) * jnp.tanh(c)
        return (h @ p["w_lin"].T + p["b_lin"]).reshape(-1)

    ref = ref_forward(x, params)
    assert jnp.allclose(out, ref, atol=2e-5, rtol=2e-5), (out, ref)

    print("KERNEL_OK")
</pallas_src>

<mosaic_0001>
module attributes {stable_mosaic.version = 11 : i64} {
  func.func @lstm_last_hidden_kernel(%arg0: memref<16x16xf32, #tpu.memory_space<vmem>>, %arg1: memref<51x128xf32, #tpu.memory_space<vmem>>, %arg2: memref<2x1xf32, #tpu.memory_space<vmem>>) attributes {dimension_semantics = [], scalar_prefetch = 0 : i64, scratch_operands = 0 : i64, tpu.core_type = #tpu.core_type<tc>} {
    %c0 = arith.constant 0 : index
    %c0_0 = arith.constant 0 : index
    %0 = vector.load %arg1[%c0, %c0_0] : memref<51x128xf32, #tpu.memory_space<vmem>>, vector<16x128xf32>
    %c16 = arith.constant 16 : index
    %c0_1 = arith.constant 0 : index
    %1 = vector.load %arg1[%c16, %c0_1] : memref<51x128xf32, #tpu.memory_space<vmem>>, vector<32x128xf32>
    %c48 = arith.constant 48 : index
    %c0_2 = arith.constant 0 : index
    %2 = vector.load %arg1[%c48, %c0_2] : memref<51x128xf32, #tpu.memory_space<vmem>>, vector<1x128xf32>
    %c49 = arith.constant 49 : index
    %c0_3 = arith.constant 0 : index
    %3 = vector.load %arg1[%c49, %c0_3] : memref<51x128xf32, #tpu.memory_space<vmem>>, vector<1x32xf32>
    %c50 = arith.constant 50 : index
    %c0_4 = arith.constant 0 : index
    %4 = vector.load %arg1[%c50, %c0_4] : memref<51x128xf32, #tpu.memory_space<vmem>>, vector<1x1xf32>
    %c0_5 = arith.constant 0 : index
    %c0_6 = arith.constant 0 : index
    %5 = vector.load %arg0[%c0_5, %c0_6] : memref<16x16xf32, #tpu.memory_space<vmem>>, vector<16x16xf32>
    %cst = arith.constant dense<0.000000e+00> : vector<16x128xf32>
    %6 = tpu.matmul %5, %0, %cst {dimension_numbers = #tpu.dot_dimension_numbers<[1], [0], [0], [1], [0, 0, 1, 1], [], []>} : vector<16x16xf32>, vector<16x128xf32>, vector<16x128xf32> -> vector<16x128xf32>
    %7 = vector.broadcast %2 : vector<1x128xf32> to vector<16x128xf32>
    %8 = arith.addf %6, %7 : vector<16x128xf32>
    %cst_7 = arith.constant 0.000000e+00 : f32
    %9 = vector.broadcast %cst_7 : f32 to vector<2x32xf32>
    %cst_8 = arith.constant 0.000000e+00 : f32
    %10 = vector.broadcast %cst_8 : f32 to vector<2x32xf32>
    %11 = vector.extract_strided_slice %8 {offsets = [0, 0], sizes = [1, 128], strides = [1, 1]} : vector<16x128xf32> to vector<1x128xf32>
    %12 = vector.extract_strided_slice %8 {offsets = [8, 0], sizes = [1, 128], strides = [1, 1]} : vector<16x128xf32> to vector<1x128xf32>
    %13 = tpu.concatenate %11, %12 in 0 : vector<1x128xf32>, vector<1x128xf32> -> vector<2x128xf32>
    %cst_9 = arith.constant dense<0.000000e+00> : vector<2x128xf32>
    %14 = tpu.matmul %9, %1, %cst_9 {dimension_numbers = #tpu.dot_dimension_numbers<[1], [0], [0], [1], [0, 0, 1, 1], [], []>} : vector<2x32xf32>, vector<32x128xf32>, vector<2x128xf32> -> vector<2x128xf32>
    %15 = arith.addf %13, %14 : vector<2x128xf32>
    %16 = arith.negf %15 : vector<2x128xf32>
    %17 = math.exp %16 : vector<2x128xf32>
    %cst_10 = arith.constant 1.000000e+00 : f32
    %18 = vector.broadcast %cst_10 : f32 to vector<2x128xf32>
    %19 = arith.addf %18, %17 : vector<2x128xf32>
    %20 = arith.divf %18, %19 : vector<2x128xf32>
    %21 = vector.extract_strided_slice %20 {offsets = [0, 0], sizes = [2, 32], strides = [1, 1]} : vector<2x128xf32> to vector<2x32xf32>
    %22 = vector.extract_strided_slice %20 {offsets = [0, 32], sizes = [2, 32], strides = [1, 1]} : vector<2x128xf32> to vector<2x32xf32>
    %23 = vector.extract_strided_slice %20 {offsets = [0, 64], sizes = [2, 32], strides = [1, 1]} : vector<2x128xf32> to vector<2x32xf32>
    %cst_11 = arith.constant 2.000000e+00 : f32
    %24 = vector.broadcast %cst_11 : f32 to vector<2x32xf32>
    %25 = arith.mulf %24, %23 : vector<2x32xf32>
    %cst_12 = arith.constant 1.000000e+00 : f32
    %26 = vector.broadcast %cst_12 : f32 to vector<2x32xf32>
    %27 = arith.subf %25, %26 : vector<2x32xf32>
    %28 = vector.extract_strided_slice %20 {offsets = [0, 96], sizes = [2, 32], strides = [1, 1]} : vector<2x128xf32> to vector<2x32xf32>
    %29 = arith.mulf %22, %10 : vector<2x32xf32>
    %30 = arith.mulf %21, %27 : vector<2x32xf32>
    %31 = arith.addf %29, %30 : vector<2x32xf32>
    %32 = math.tanh %31 : vector<2x32xf32>
    %33 = arith.mulf %28, %32 : vector<2x32xf32>
    %34 = vector.extract_strided_slice %8 {offsets = [1, 0], sizes = [1, 128], strides = [1, 1]} : vector<16x128xf32> to vector<1x128xf32>
    %35 = vector.extract_strided_slice %8 {offsets = [9, 0], sizes = [1, 128], strides = [1, 1]} : vector<16x128xf32> to vector<1x128xf32>
    %36 = tpu.concatenate %34, %35 in 0 : vector<1x128xf32>, vector<1x128xf32> -> vector<2x128xf32>
    %cst_13 = arith.constant dense<0.000000e+00> : vector<2x128xf32>
    %37 = tpu.matmul %33, %1, %cst_13 {dimension_numbers = #tpu.dot_dimension_numbers<[1], [0], [0], [1], [0, 0, 1, 1], [], []>} : vector<2x32xf32>, vector<32x128xf32>, vector<2x128xf32> -> vector<2x128xf32>
    %38 = arith.addf %36, %37 : vector<2x128xf32>
    %39 = arith.negf %38 : vector<2x128xf32>
    %40 = math.exp %39 : vector<2x128xf32>
    %cst_14 = arith.constant 1.000000e+00 : f32
    %41 = vector.broadcast %cst_14 : f32 to vector<2x128xf32>
    %42 = arith.addf %41, %40 : vector<2x128xf32>
    %43 = arith.divf %41, %42 : vector<2x128xf32>
    %44 = vector.extract_strided_slice %43 {offsets = [0, 0], sizes = [2, 32], strides = [1, 1]} : vector<2x128xf32> to vector<2x32xf32>
    %45 = vector.extract_strided_slice %43 {offsets = [0, 32], sizes = [2, 32], strides = [1, 1]} : vector<2x128xf32> to vector<2x32xf32>
    %46 = vector.extract_strided_slice %43 {offsets = [0, 64], sizes = [2, 32], strides = [1, 1]} : vector<2x128xf32> to vector<2x32xf32>
    %cst_15 = arith.constant 2.000000e+00 : f32
    %47 = vector.broadcast %cst_15 : f32 to vector<2x32xf32>
    %48 = arith.mulf %47, %46 : vector<2x32xf32>
    %cst_16 = arith.constant 1.000000e+00 : f32
    %49 = vector.broadcast %cst_16 : f32 to vector<2x32xf32>
    %50 = arith.subf %48, %49 : vector<2x32xf32>
    %51 = vector.extract_strided_slice %43 {offsets = [0, 96], sizes = [2, 32], strides = [1, 1]} : vector<2x128xf32> to vector<2x32xf32>
    %52 = arith.mulf %45, %31 : vector<2x32xf32>
    %53 = arith.mulf %44, %50 : vector<2x32xf32>
    %54 = arith.addf %52, %53 : vector<2x32xf32>
    %55 = math.tanh %54 : vector<2x32xf32>
    %56 = arith.mulf %51, %55 : vector<2x32xf32>
    %57 = vector.extract_strided_slice %8 {offsets = [2, 0], sizes = [1, 128], strides = [1, 1]} : vector<16x128xf32> to vector<1x128xf32>
    %58 = vector.extract_strided_slice %8 {offsets = [10, 0], sizes = [1, 128], strides = [1, 1]} : vector<16x128xf32> to vector<1x128xf32>
    %59 = tpu.concatenate %57, %58 in 0 : vector<1x128xf32>, vector<1x128xf32> -> vector<2x128xf32>
    %cst_17 = arith.constant dense<0.000000e+00> : vector<2x128xf32>
    %60 = tpu.matmul %56, %1, %cst_17 {dimension_numbers = #tpu.dot_dimension_numbers<[1], [0], [0], [1], [0, 0, 1, 1], [], []>} : vector<2x32xf32>, vector<32x128xf32>, vector<2x128xf32> -> vector<2x128xf32>
    %61 = arith.addf %59, %60 : vector<2x128xf32>
    %62 = arith.negf %61 : vector<2x128xf32>
    %63 = math.exp %62 : vector<2x128xf32>
    %cst_18 = arith.constant 1.000000e+00 : f32
    %64 = vector.broadcast %cst_18 : f32 to vector<2x128xf32>
    %65 = arith.addf %64, %63 : vector<2x128xf32>
    %66 = arith.divf %64, %65 : vector<2x128xf32>
    %67 = vector.extract_strided_slice %66 {offsets = [0, 0], sizes = [2, 32], strides = [1, 1]} : vector<2x128xf32> to vector<2x32xf32>
    %68 = vector.extract_strided_slice %66 {offsets = [0, 32], sizes = [2, 32], strides = [1, 1]} : vector<2x128xf32> to vector<2x32xf32>
    %69 = vector.extract_strided_slice %66 {offsets = [0, 64], sizes = [2, 32], strides = [1, 1]} : vector<2x128xf32> to vector<2x32xf32>
    %cst_19 = arith.constant 2.000000e+00 : f32
    %70 = vector.broadcast %cst_19 : f32 to vector<2x32xf32>
    %71 = arith.mulf %70, %69 : vector<2x32xf32>
    %cst_20 = arith.constant 1.000000e+00 : f32
    %72 = vector.broadcast %cst_20 : f32 to vector<2x32xf32>
    %73 = arith.subf %71, %72 : vector<2x32xf32>
    %74 = vector.extract_strided_slice %66 {offsets = [0, 96], sizes = [2, 32], strides = [1, 1]} : vector<2x128xf32> to vector<2x32xf32>
    %75 = arith.mulf %68, %54 : vector<2x32xf32>
    %76 = arith.mulf %67, %73 : vector<2x32xf32>
    %77 = arith.addf %75, %76 : vector<2x32xf32>
    %78 = math.tanh %77 : vector<2x32xf32>
    %79 = arith.mulf %74, %78 : vector<2x32xf32>
    %80 = vector.extract_strided_slice %8 {offsets = [3, 0], sizes = [1, 128], strides = [1, 1]} : vector<16x128xf32> to vector<1x128xf32>
    %81 = vector.extract_strided_slice %8 {offsets = [11, 0], sizes = [1, 128], strides = [1, 1]} : vector<16x128xf32> to vector<1x128xf32>
    %82 = tpu.concatenate %80, %81 in 0 : vector<1x128xf32>, vector<1x128xf32> -> vector<2x128xf32>
    %cst_21 = arith.constant dense<0.000000e+00> : vector<2x128xf32>
    %83 = tpu.matmul %79, %1, %cst_21 {dimension_numbers = #tpu.dot_dimension_numbers<[1], [0], [0], [1], [0, 0, 1, 1], [], []>} : vector<2x32xf32>, vector<32x128xf32>, vector<2x128xf32> -> vector<2x128xf32>
    %84 = arith.addf %82, %83 : vector<2x128xf32>
    %85 = arith.negf %84 : vector<2x128xf32>
    %86 = math.exp %85 : vector<2x128xf32>
    %cst_22 = arith.constant 1.000000e+00 : f32
    %87 = vector.broadcast %cst_22 : f32 to vector<2x128xf32>
    %88 = arith.addf %87, %86 : vector<2x128xf32>
    %89 = arith.divf %87, %88 : vector<2x128xf32>
    %90 = vector.extract_strided_slice %89 {offsets = [0, 0], sizes = [2, 32], strides = [1, 1]} : vector<2x128xf32> to vector<2x32xf32>
    %91 = vector.extract_strided_slice %89 {offsets = [0, 32], sizes = [2, 32], strides = [1, 1]} : vector<2x128xf32> to vector<2x32xf32>
    %92 = vector.extract_strided_slice %89 {offsets = [0, 64], sizes = [2, 32], strides = [1, 1]} : vector<2x128xf32> to vector<2x32xf32>
    %cst_23 = arith.constant 2.000000e+00 : f32
    %93 = vector.broadcast %cst_23 : f32 to vector<2x32xf32>
    %94 = arith.mulf %93, %92 : vector<2x32xf32>
    %cst_24 = arith.constant 1.000000e+00 : f32
    %95 = vector.broadcast %cst_24 : f32 to vector<2x32xf32>
    %96 = arith.subf %94, %95 : vector<2x32xf32>
    %97 = vector.extract_strided_slice %89 {offsets = [0, 96], sizes = [2, 32], strides = [1, 1]} : vector<2x128xf32> to vector<2x32xf32>
    %98 = arith.mulf %91, %77 : vector<2x32xf32>
    %99 = arith.mulf %90, %96 : vector<2x32xf32>
    %100 = arith.addf %98, %99 : vector<2x32xf32>
    %101 = math.tanh %100 : vector<2x32xf32>
    %102 = arith.mulf %97, %101 : vector<2x32xf32>
    %103 = vector.extract_strided_slice %8 {offsets = [4, 0], sizes = [1, 128], strides = [1, 1]} : vector<16x128xf32> to vector<1x128xf32>
    %104 = vector.extract_strided_slice %8 {offsets = [12, 0], sizes = [1, 128], strides = [1, 1]} : vector<16x128xf32> to vector<1x128xf32>
    %105 = tpu.concatenate %103, %104 in 0 : vector<1x128xf32>, vector<1x128xf32> -> vector<2x128xf32>
    %cst_25 = arith.constant dense<0.000000e+00> : vector<2x128xf32>
    %106 = tpu.matmul %102, %1, %cst_25 {dimension_numbers = #tpu.dot_dimension_numbers<[1], [0], [0], [1], [0, 0, 1, 1], [], []>} : vector<2x32xf32>, vector<32x128xf32>, vector<2x128xf32> -> vector<2x128xf32>
    %107 = arith.addf %105, %106 : vector<2x128xf32>
    %108 = arith.negf %107 : vector<2x128xf32>
    %109 = math.exp %108 : vector<2x128xf32>
    %cst_26 = arith.constant 1.000000e+00 : f32
    %110 = vector.broadcast %cst_26 : f32 to vector<2x128xf32>
    %111 = arith.addf %110, %109 : vector<2x128xf32>
    %112 = arith.divf %110, %111 : vector<2x128xf32>
    %113 = vector.extract_strided_slice %112 {offsets = [0, 0], sizes = [2, 32], strides = [1, 1]} : vector<2x128xf32> to vector<2x32xf32>
    %114 = vector.extract_strided_slice %112 {offsets = [0, 32], sizes = [2, 32], strides = [1, 1]} : vector<2x128xf32> to vector<2x32xf32>
    %115 = vector.extract_strided_slice %112 {offsets = [0, 64], sizes = [2, 32], strides = [1, 1]} : vector<2x128xf32> to vector<2x32xf32>
    %cst_27 = arith.constant 2.000000e+00 : f32
    %116 = vector.broadcast %cst_27 : f32 to vector<2x32xf32>
    %117 = arith.mulf %116, %115 : vector<2x32xf32>
    %cst_28 = arith.constant 1.000000e+00 : f32
    %118 = vector.broadcast %cst_28 : f32 to vector<2x32xf32>
    %119 = arith.subf %117, %118 : vector<2x32xf32>
    %120 = vector.extract_strided_slice %112 {offsets = [0, 96], sizes = [2, 32], strides = [1, 1]} : vector<2x128xf32> to vector<2x32xf32>
    %121 = arith.mulf %114, %100 : vector<2x32xf32>
    %122 = arith.mulf %113, %119 : vector<2x32xf32>
    %123 = arith.addf %121, %122 : vector<2x32xf32>
    %124 = math.tanh %123 : vector<2x32xf32>
    %125 = arith.mulf %120, %124 : vector<2x32xf32>
    %126 = vector.extract_strided_slice %8 {offsets = [5, 0], sizes = [1, 128], strides = [1, 1]} : vector<16x128xf32> to vector<1x128xf32>
    %127 = vector.extract_strided_slice %8 {offsets = [13, 0], sizes = [1, 128], strides = [1, 1]} : vector<16x128xf32> to vector<1x128xf32>
    %128 = tpu.concatenate %126, %127 in 0 : vector<1x128xf32>, vector<1x128xf32> -> vector<2x128xf32>
    %cst_29 = arith.constant dense<0.000000e+00> : vector<2x128xf32>
    %129 = tpu.matmul %125, %1, %cst_29 {dimension_numbers = #tpu.dot_dimension_numbers<[1], [0], [0], [1], [0, 0, 1, 1], [], []>} : vector<2x32xf32>, vector<32x128xf32>, vector<2x128xf32> -> vector<2x128xf32>
    %130 = arith.addf %128, %129 : vector<2x128xf32>
    %131 = arith.negf %130 : vector<2x128xf32>
    %132 = math.exp %131 : vector<2x128xf32>
    %cst_30 = arith.constant 1.000000e+00 : f32
    %133 = vector.broadcast %cst_30 : f32 to vector<2x128xf32>
    %134 = arith.addf %133, %132 : vector<2x128xf32>
    %135 = arith.divf %133, %134 : vector<2x128xf32>
    %136 = vector.extract_strided_slice %135 {offsets = [0, 0], sizes = [2, 32], strides = [1, 1]} : vector<2x128xf32> to vector<2x32xf32>
    %137 = vector.extract_strided_slice %135 {offsets = [0, 32], sizes = [2, 32], strides = [1, 1]} : vector<2x128xf32> to vector<2x32xf32>
    %138 = vector.extract_strided_slice %135 {offsets = [0, 64], sizes = [2, 32], strides = [1, 1]} : vector<2x128xf32> to vector<2x32xf32>
    %cst_31 = arith.constant 2.000000e+00 : f32
    %139 = vector.broadcast %cst_31 : f32 to vector<2x32xf32>
    %140 = arith.mulf %139, %138 : vector<2x32xf32>
    %cst_32 = arith.constant 1.000000e+00 : f32
    %141 = vector.broadcast %cst_32 : f32 to vector<2x32xf32>
    %142 = arith.subf %140, %141 : vector<2x32xf32>
    %143 = vector.extract_strided_slice %135 {offsets = [0, 96], sizes = [2, 32], strides = [1, 1]} : vector<2x128xf32> to vector<2x32xf32>
    %144 = arith.mulf %137, %123 : vector<2x32xf32>
    %145 = arith.mulf %136, %142 : vector<2x32xf32>
    %146 = arith.addf %144, %145 : vector<2x32xf32>
    %147 = math.tanh %146 : vector<2x32xf32>
    %148 = arith.mulf %143, %147 : vector<2x32xf32>
    %149 = vector.extract_strided_slice %8 {offsets = [6, 0], sizes = [1, 128], strides = [1, 1]} : vector<16x128xf32> to vector<1x128xf32>
    %150 = vector.extract_strided_slice %8 {offsets = [14, 0], sizes = [1, 128], strides = [1, 1]} : vector<16x128xf32> to vector<1x128xf32>
    %151 = tpu.concatenate %149, %150 in 0 : vector<1x128xf32>, vector<1x128xf32> -> vector<2x128xf32>
    %cst_33 = arith.constant dense<0.000000e+00> : vector<2x128xf32>
    %152 = tpu.matmul %148, %1, %cst_33 {dimension_numbers = #tpu.dot_dimension_numbers<[1], [0], [0], [1], [0, 0, 1, 1], [], []>} : vector<2x32xf32>, vector<32x128xf32>, vector<2x128xf32> -> vector<2x128xf32>
    %153 = arith.addf %151, %152 : vector<2x128xf32>
    %154 = arith.negf %153 : vector<2x128xf32>
    %155 = math.exp %154 : vector<2x128xf32>
    %cst_34 = arith.constant 1.000000e+00 : f32
    %156 = vector.broadcast %cst_34 : f32 to vector<2x128xf32>
    %157 = arith.addf %156, %155 : vector<2x128xf32>
    %158 = arith.divf %156, %157 : vector<2x128xf32>
    %159 = vector.extract_strided_slice %158 {offsets = [0, 0], sizes = [2, 32], strides = [1, 1]} : vector<2x128xf32> to vector<2x32xf32>
    %160 = vector.extract_strided_slice %158 {offsets = [0, 32], sizes = [2, 32], strides = [1, 1]} : vector<2x128xf32> to vector<2x32xf32>
    %161 = vector.extract_strided_slice %158 {offsets = [0, 64], sizes = [2, 32], strides = [1, 1]} : vector<2x128xf32> to vector<2x32xf32>
    %cst_35 = arith.constant 2.000000e+00 : f32
    %162 = vector.broadcast %cst_35 : f32 to vector<2x32xf32>
    %163 = arith.mulf %162, %161 : vector<2x32xf32>
    %cst_36 = arith.constant 1.000000e+00 : f32
    %164 = vector.broadcast %cst_36 : f32 to vector<2x32xf32>
    %165 = arith.subf %163, %164 : vector<2x32xf32>
    %166 = vector.extract_strided_slice %158 {offsets = [0, 96], sizes = [2, 32], strides = [1, 1]} : vector<2x128xf32> to vector<2x32xf32>
    %167 = arith.mulf %160, %146 : vector<2x32xf32>
    %168 = arith.mulf %159, %165 : vector<2x32xf32>
    %169 = arith.addf %167, %168 : vector<2x32xf32>
    %170 = math.tanh %169 : vector<2x32xf32>
    %171 = arith.mulf %166, %170 : vector<2x32xf32>
    %172 = vector.extract_strided_slice %8 {offsets = [7, 0], sizes = [1, 128], strides = [1, 1]} : vector<16x128xf32> to vector<1x128xf32>
    %173 = vector.extract_strided_slice %8 {offsets = [15, 0], sizes = [1, 128], strides = [1, 1]} : vector<16x128xf32> to vector<1x128xf32>
    %174 = tpu.concatenate %172, %173 in 0 : vector<1x128xf32>, vector<1x128xf32> -> vector<2x128xf32>
    %cst_37 = arith.constant dense<0.000000e+00> : vector<2x128xf32>
    %175 = tpu.matmul %171, %1, %cst_37 {dimension_numbers = #tpu.dot_dimension_numbers<[1], [0], [0], [1], [0, 0, 1, 1], [], []>} : vector<2x32xf32>, vector<32x128xf32>, vector<2x128xf32> -> vector<2x128xf32>
    %176 = arith.addf %174, %175 : vector<2x128xf32>
    %177 = arith.negf %176 : vector<2x128xf32>
    %178 = math.exp %177 : vector<2x128xf32>
    %cst_38 = arith.constant 1.000000e+00 : f32
    %179 = vector.broadcast %cst_38 : f32 to vector<2x128xf32>
    %180 = arith.addf %179, %178 : vector<2x128xf32>
    %181 = arith.divf %179, %180 : vector<2x128xf32>
    %182 = vector.extract_strided_slice %181 {offsets = [0, 0], sizes = [2, 32], strides = [1, 1]} : vector<2x128xf32> to vector<2x32xf32>
    %183 = vector.extract_strided_slice %181 {offsets = [0, 32], sizes = [2, 32], strides = [1, 1]} : vector<2x128xf32> to vector<2x32xf32>
    %184 = vector.extract_strided_slice %181 {offsets = [0, 64], sizes = [2, 32], strides = [1, 1]} : vector<2x128xf32> to vector<2x32xf32>
    %cst_39 = arith.constant 2.000000e+00 : f32
    %185 = vector.broadcast %cst_39 : f32 to vector<2x32xf32>
    %186 = arith.mulf %185, %184 : vector<2x32xf32>
    %cst_40 = arith.constant 1.000000e+00 : f32
    %187 = vector.broadcast %cst_40 : f32 to vector<2x32xf32>
    %188 = arith.subf %186, %187 : vector<2x32xf32>
    %189 = vector.extract_strided_slice %181 {offsets = [0, 96], sizes = [2, 32], strides = [1, 1]} : vector<2x128xf32> to vector<2x32xf32>
    %190 = arith.mulf %183, %169 : vector<2x32xf32>
    %191 = arith.mulf %182, %188 : vector<2x32xf32>
    %192 = arith.addf %190, %191 : vector<2x32xf32>
    %193 = math.tanh %192 : vector<2x32xf32>
    %194 = arith.mulf %189, %193 : vector<2x32xf32>
    %195 = vector.broadcast %3 : vector<1x32xf32> to vector<2x32xf32>
    %196 = arith.mulf %194, %195 : vector<2x32xf32>
    %cst_41 = arith.constant dense<0.000000e+00> : vector<2xf32>
    %197 = vector.multi_reduction <add>, %196, %cst_41 [1] : vector<2x32xf32> to vector<2xf32>
    %198 = vector.shape_cast %197 : vector<2xf32> to vector<2x1xf32>
    %199 = vector.broadcast %4 : vector<1x1xf32> to vector<2x1xf32>
    %200 = arith.addf %198, %199 : vector<2x1xf32>
    %c0_42 = arith.constant 0 : index
    %c0_43 = arith.constant 0 : index
    %201 = vector.load %arg2[%c0_42, %c0_43] : memref<2x1xf32, #tpu.memory_space<vmem>>, vector<2x1xf32>
    tpu.vector_store %arg2[%c0_42, %c0_43], %200 {strides = array<i32>} : memref<2x1xf32, #tpu.memory_space<vmem>>, vector<2x1xf32>,
    return
  }
}

</mosaic_0001>

<llo_original>
// kernel: shallow_lstm_forward.1
$region0: #{shallow_lstm_forward.1}
  #allocation0 [shape = 'u32[]', space=smem, size = 0x4, offset = 0x4, fixed_abs, tag = 'smem constant byte address 0x4 - core index']
  #allocation1 [shape = 'u32[72,128]{1,0:T(1,128)}', space=vmem, size = 0x9000, scoped, tag = 'internal scratch']
  %s0 = inlined_call_operand.hbm [shape: f32[16,16], index: 0, kind: input, shape index: {}]
  %s1 = inlined_call_operand.hbm [shape: f32[51,128], index: 1, kind: input, shape index: {}]
  %s2 = inlined_call_operand.vmem [shape: f32[2,1], index: 2, kind: output, shape index: {}]
  %s3 = sld [smem:[#allocation0]]
  $region26: #{shallow_lstm_forward.1} parent=0
    _
  %s5 = ssub.s32 1, %s3
  %s6 = scalar_select 0, %s5, %s3
  $region1: #{shallow_lstm_forward.1} parent=0
    #allocation2 [shape = 'u8[8192]{0}', space=vmem, size = 0x2000, scoped, tag = 'input window, operand 0, single buffered']
    #allocation3 [shape = 's32[1]{0}', space=sflag, size = 0x4, scoped, tag = 'scoped memory for shallow_lstm_forward.1']
    #allocation4 [shape = 'u8[28672]{0}', space=vmem, size = 0x7000, scoped, tag = 'input window, operand 1, single buffered']
    #allocation5 [shape = 's32[1]{0}', space=sflag, size = 0x4, scoped, tag = 'scoped memory for shallow_lstm_forward.1']
    %7 = vsyncpa [#allocation3], 0
    %8 = vsyncpa [#allocation5], 0
    // Predicated region
    $region2: #{shallow_lstm_forward.1} parent=1 // pred_check
      _
    $region3: #{shallow_lstm_forward.1} parent=1 // pred_check_branch
      %10 = sbr.rel (0) target = $region5
    $region4: #{shallow_lstm_forward.1} parent=1 // pred_region
      %12 = vsyncadd [#allocation3], 0
      %s13 = sshll.u32 %s0, 4
      %s14 = int_to_ptr.hbm [resolvable:$true] %s13
      %s15 = sshll.u32 [#allocation2], 4
      %s16 = int_to_ptr.vmem [resolvable:$true] %s15
      %21 = dma.hbm_to_vmem [thread:$0]  %s14, 256, %s16, [#allocation3], 128, 128, 8
    $region5: #{shallow_lstm_forward.1} parent=1 // pred_fallthru
      _
    // Predicated region
    $region6: #{shallow_lstm_forward.1} parent=1 // pred_check
      _
    $region7: #{shallow_lstm_forward.1} parent=1 // pred_check_branch
      %23 = sbr.rel (0) target = $region9
    $region8: #{shallow_lstm_forward.1} parent=1 // pred_region
      %25 = vsyncadd [#allocation5], 0
      %s26 = sshll.u32 %s1, 4
      %s27 = int_to_ptr.hbm [resolvable:$true] %s26
      %s28 = sshll.u32 [#allocation4], 4
      %s29 = int_to_ptr.vmem [resolvable:$true] %s28
      %34 = dma.hbm_to_vmem [thread:$0]  %s27, 896, %s29, [#allocation5], 128, 128, 8
    $region9: #{shallow_lstm_forward.1} parent=1 // pred_fallthru
      _
    // Predicated region
    $region10: #{shallow_lstm_forward.1} parent=1 // pred_check
      _
    $region11: #{shallow_lstm_forward.1} parent=1 // pred_check_branch
      %36 = sbr.rel (0) target = $region13
    $region12: #{shallow_lstm_forward.1} parent=1 // pred_region
      %38 = dma.done [#allocation3], 256
    $region13: #{shallow_lstm_forward.1} parent=1 // pred_fallthru
      _
    // Predicated region
    $region14: #{shallow_lstm_forward.1} parent=1 // pred_check
      _
    $region15: #{shallow_lstm_forward.1} parent=1 // pred_check_branch
      %40 = sbr.rel (0) target = $region17
    $region16: #{shallow_lstm_forward.1} parent=1 // pred_region
      %42 = dma.done [#allocation5], 896
    $region17: #{shallow_lstm_forward.1} parent=1 // pred_fallthru
      _
    %v43 = vld [vmem:[#allocation4] sm:$0xff]
    %v44 = vld [vmem:[#allocation4 + $0x8] sm:$0xff]
    %v45 = vld [vmem:[#allocation4 + $0x10] sm:$0xff]
    %v46 = vld [vmem:[#allocation4 + $0x18] sm:$0xff]
    %v47 = vld [vmem:[#allocation4 + $0x20] sm:$0xff]
    %v48 = vld [vmem:[#allocation4 + $0x28] sm:$0xff]
    %v49 = vld [vmem:[#allocation4 + $0x30] sm:$0x1]
    %v50 = vld [vmem:[#allocation4 + $0x31] sm:$0x1]
    %v51 = vld [vmem:[#allocation4 + $0x32] sm:$0x1]
    %v52 = vld [vmem:[#allocation2] sm:$0xff]
    %v53 = vld [vmem:[#allocation2 + $0x8] sm:$0xff]
    %v54 = vperm.slane %v49, 0
    %vm55 = vcmask 130048
    %v57 = vsel %vm55, %v52, 0
    %v60 = vsel %vm55, %v53, 0
    %62 = vmatpush.msra.mxu0 0.0
    %63 = vmatpush.msra.mxu0 0.0
    %64 = vmatpush.msra.mxu0 0.0
    %65 = vmatpush.msra.mxu0 0.0
    %66 = vmatpush.msra.mxu0 0.0
    %67 = vmatpush.msra.mxu0 0.0
    %68 = vmatpush.msra.mxu0 0.0
    %69 = vmatpush.msra.mxu0 0.0
    %70 = vmatpush.msra.mxu0 0.0
    %71 = vmatpush.msra.mxu0 0.0
    %72 = vmatpush.msra.mxu0 0.0
    %73 = vmatpush.msra.mxu0 0.0
    %74 = vmatpush.msra.mxu0 0.0
    %75 = vmatpush.msra.mxu0 0.0
    %76 = vmatpush.msra.mxu0 %v44
    %77 = vmatpush.msra.mxu0 %v43
    %78 = vmatmul.f32.gmra.mxu0 %v57
    %v79 = vpop.f32.mrf.mxu0
    %v80 = vadd.f32 %v54, %v79
    %81 = vmatmul.f32.gmra.mxu0 %v60
    %v82 = vpop.f32.mrf.mxu0
    %v83 = vadd.f32 %v54, %v82
    %84 = vdwg.mxu0
    %v86 = vrot.slane %v83, 7
    %vm88 = vcmask 1040384
    %v89 = vsel %vm88, %v80, %v86
    %vm90 = vcmask 261120
    %v92 = vsel %vm90, 0.0, 0
    %94 = vmatpush.msra.mxu0 0.0
    %95 = vmatpush.msra.mxu0 0.0
    %96 = vmatpush.msra.mxu0 0.0
    %97 = vmatpush.msra.mxu0 0.0
    %98 = vmatpush.msra.mxu0 0.0
    %99 = vmatpush.msra.mxu0 0.0
    %100 = vmatpush.msra.mxu0 0.0
    %101 = vmatpush.msra.mxu0 0.0
    %102 = vmatpush.msra.mxu0 0.0
    %103 = vmatpush.msra.mxu0 0.0
    %104 = vmatpush.msra.mxu0 0.0
    %105 = vmatpush.msra.mxu0 0.0
    %106 = vmatpush.msra.mxu0 %v48
    %107 = vmatpush.msra.mxu0 %v47
    %108 = vmatpush.msra.mxu0 %v46
    %109 = vmatpush.msra.mxu0 %v45
    %110 = vmatmul.f32.gmra.mxu0 %v92
    %v111 = vpop.f32.mrf.mxu0
    %v112 = vadd.f32 0.0, %v111
    %113 = vdwg.mxu0
    %v114 = vadd.f32 %v89, %v112
    %v115 = vxor.u32 %v114, 2147483648
    %v116 = vmul.f32 %v115, 1.442695
    %v117 = vpow.pop %v116
    %v118 = vadd.f32 %v117, 1.0
    %v119 = vrcp.pop %v118
    %v120 = vmul.f32 %v118, %v119
    %v121 = vsub.f32 1.0, %v120
    %v122 = vmul.f32 %v119, %v121
    %v123 = vadd.f32 %v119, %v122
    %vm124 = vweird.f32 %v118
    %vm125 = vweird.f32 %v119
    %vm126 = vmor %vm124, %vm125
    %v127 = vsel %vm126, %v119, %v123
    %v128 = vand.u32 2147483647, %v118
    %vm129 = vcmp.eq.f32.partialorder %v128, 8.507059e+37
    %v130 = vand.u32 %v118, 2147483648
    %v131 = vor.u32 1.1754944e-38, %v130
    %v132 = vsel %vm129, %v131, %v127
    %v133 = vmul.f32 1.0, %v132
    %v134 = vmul.f32 %v133, 2.0
    %v135 = vsub.f32 %v134, 1.0
    %v136 = vmul.f32 %v133, 0.0
    %138 = vrot.lane.b32.xlu0 %v135, 64
    %v139 = vpop.permute.xlu0 %138
    %v141 = vmul.f32 %v133, %v139
    %143 = vrot.lane.b32.xlu0 %v141, 32
    %v144 = vpop.permute.xlu0 %143
    %v146 = vadd.f32 %v136, %v144
    %v147 = vtanh.pop %v146
    %149 = vrot.lane.b32.xlu0 %v147, 64
    %v150 = vpop.permute.xlu0 %149
    %v152 = vmul.f32 %v133, %v150
    %v154 = vrot.slane %v80, 1
    %v156 = vsel %vm88, %v154, %v83
    %158 = vrot.lane.b32.xlu0 %v152, 32
    %v159 = vpop.permute.xlu0 %158
    %v160 = vsel %vm90, %v159, 0
    %162 = vmatpush.msra.mxu0 0.0
    %163 = vmatpush.msra.mxu0 0.0
    %164 = vmatpush.msra.mxu0 0.0
    %165 = vmatpush.msra.mxu0 0.0
    %166 = vmatpush.msra.mxu0 0.0
    %167 = vmatpush.msra.mxu0 0.0
    %168 = vmatpush.msra.mxu0 0.0
    %169 = vmatpush.msra.mxu0 0.0
    %170 = vmatpush.msra.mxu0 0.0
    %171 = vmatpush.msra.mxu0 0.0
    %172 = vmatpush.msra.mxu0 0.0
    %173 = vmatpush.msra.mxu0 0.0
    %174 = vmatpush.msra.mxu0 %v48
    %175 = vmatpush.msra.mxu0 %v47
    %176 = vmatpush.msra.mxu0 %v46
    %177 = vmatpush.msra.mxu0 %v45
    %178 = vmatmul.f32.gmra.mxu0 %v160
    %v179 = vpop.f32.mrf.mxu0
    %v180 = vadd.f32 0.0, %v179
    %181 = vdwg.mxu0
    %v182 = vadd.f32 %v156, %v180
    %v183 = vxor.u32 %v182, 2147483648
    %v184 = vmul.f32 %v183, 1.442695
    %v185 = vpow.pop %v184
    %v186 = vadd.f32 %v185, 1.0
    %v187 = vrcp.pop %v186
    %v188 = vmul.f32 %v186, %v187
    %v189 = vsub.f32 1.0, %v188
    %v190 = vmul.f32 %v187, %v189
    %v191 = vadd.f32 %v187, %v190
    %vm192 = vweird.f32 %v186
    %vm193 = vweird.f32 %v187
    %vm194 = vmor %vm192, %vm193
    %v195 = vsel %vm194, %v187, %v191
    %v196 = vand.u32 2147483647, %v186
    %vm197 = vcmp.eq.f32.partialorder %v196, 8.507059e+37
    %v198 = vand.u32 %v186, 2147483648
    %v199 = vor.u32 1.1754944e-38, %v198
    %v200 = vsel %vm197, %v199, %v195
    %v201 = vmul.f32 1.0, %v200
    %v202 = vmul.f32 %v201, 2.0
    %v203 = vsub.f32 %v202, 1.0
    %v204 = vmul.f32 %v201, %v146
    %206 = vrot.lane.b32.xlu0 %v203, 64
    %v207 = vpop.permute.xlu0 %206
    %v209 = vmul.f32 %v201, %v207
    %211 = vrot.lane.b32.xlu0 %v209, 32
    %v212 = vpop.permute.xlu0 %211
    %v214 = vadd.f32 %v204, %v212
    %v215 = vtanh.pop %v214
    %217 = vrot.lane.b32.xlu0 %v215, 64
    %v218 = vpop.permute.xlu0 %217
    %v220 = vmul.f32 %v201, %v218
    %v221 = vrot.slane %v80, 2
    %v223 = vrot.slane %v83, 1
    %v225 = vsel %vm88, %v221, %v223
    %227 = vrot.lane.b32.xlu0 %v220, 32
    %v228 = vpop.permute.xlu0 %227
    %v229 = vsel %vm90, %v228, 0
    %231 = vmatpush.msra.mxu0 0.0
    %232 = vmatpush.msra.mxu0 0.0
    %233 = vmatpush.msra.mxu0 0.0
    %234 = vmatpush.msra.mxu0 0.0
    %235 = vmatpush.msra.mxu0 0.0
    %236 = vmatpush.msra.mxu0 0.0
    %237 = vmatpush.msra.mxu0 0.0
    %238 = vmatpush.msra.mxu0 0.0
    %239 = vmatpush.msra.mxu0 0.0
    %240 = vmatpush.msra.mxu0 0.0
    %241 = vmatpush.msra.mxu0 0.0
    %242 = vmatpush.msra.mxu0 0.0
    %243 = vmatpush.msra.mxu0 %v48
    %244 = vmatpush.msra.mxu0 %v47
    %245 = vmatpush.msra.mxu0 %v46
    %246 = vmatpush.msra.mxu0 %v45
    %247 = vmatmul.f32.gmra.mxu0 %v229
    %v248 = vpop.f32.mrf.mxu0
    %v249 = vadd.f32 0.0, %v248
    %250 = vdwg.mxu0
    %v251 = vadd.f32 %v225, %v249
    %v252 = vxor.u32 %v251, 2147483648
    %v253 = vmul.f32 %v252, 1.442695
    %v254 = vpow.pop %v253
    %v255 = vadd.f32 %v254, 1.0
    %v256 = vrcp.pop %v255
    %v257 = vmul.f32 %v255, %v256
    %v258 = vsub.f32 1.0, %v257
    %v259 = vmul.f32 %v256, %v258
    %v260 = vadd.f32 %v256, %v259
    %vm261 = vweird.f32 %v255
    %vm262 = vweird.f32 %v256
    %vm263 = vmor %vm261, %vm262
    %v264 = vsel %vm263, %v256, %v260
    %v265 = vand.u32 2147483647, %v255
    %vm266 = vcmp.eq.f32.partialorder %v265, 8.507059e+37
    %v267 = vand.u32 %v255, 2147483648
    %v268 = vor.u32 1.1754944e-38, %v267
    %v269 = vsel %vm266, %v268, %v264
    %v270 = vmul.f32 1.0, %v269
    %v271 = vmul.f32 %v270, 2.0
    %v272 = vsub.f32 %v271, 1.0
    %v273 = vmul.f32 %v270, %v214
    %275 = vrot.lane.b32.xlu0 %v272, 64
    %v276 = vpop.permute.xlu0 %275
    %v278 = vmul.f32 %v270, %v276
    %280 = vrot.lane.b32.xlu0 %v278, 32
    %v281 = vpop.permute.xlu0 %280
    %v283 = vadd.f32 %v273, %v281
    %v284 = vtanh.pop %v283
    %286 = vrot.lane.b32.xlu0 %v284, 64
    %v287 = vpop.permute.xlu0 %286
    %v289 = vmul.f32 %v270, %v287
    %v290 = vrot.slane %v80, 3
    %v292 = vrot.slane %v83, 2
    %v294 = vsel %vm88, %v290, %v292
    %296 = vrot.lane.b32.xlu0 %v289, 32
    %v297 = vpop.permute.xlu0 %296
    %v298 = vsel %vm90, %v297, 0
    %300 = vmatpush.msra.mxu0 0.0
    %301 = vmatpush.msra.mxu0 0.0
    %302 = vmatpush.msra.mxu0 0.0
    %303 = vmatpush.msra.mxu0 0.0
    %304 = vmatpush.msra.mxu0 0.0
    %305 = vmatpush.msra.mxu0 0.0
    %306 = vmatpush.msra.mxu0 0.0
    %307 = vmatpush.msra.mxu0 0.0
    %308 = vmatpush.msra.mxu0 0.0
    %309 = vmatpush.msra.mxu0 0.0
    %310 = vmatpush.msra.mxu0 0.0
    %311 = vmatpush.msra.mxu0 0.0
    %312 = vmatpush.msra.mxu0 %v48
    %313 = vmatpush.msra.mxu0 %v47
    %314 = vmatpush.msra.mxu0 %v46
    %315 = vmatpush.msra.mxu0 %v45
    %316 = vmatmul.f32.gmra.mxu0 %v298
    %v317 = vpop.f32.mrf.mxu0
    %v318 = vadd.f32 0.0, %v317
    %319 = vdwg.mxu0
    %v320 = vadd.f32 %v294, %v318
    %v321 = vxor.u32 %v320, 2147483648
    %v322 = vmul.f32 %v321, 1.442695
    %v323 = vpow.pop %v322
    %v324 = vadd.f32 %v323, 1.0
    %v325 = vrcp.pop %v324
    %v326 = vmul.f32 %v324, %v325
    %v327 = vsub.f32 1.0, %v326
    %v328 = vmul.f32 %v325, %v327
    %v329 = vadd.f32 %v325, %v328
    %vm330 = vweird.f32 %v324
    %vm331 = vweird.f32 %v325
    %vm332 = vmor %vm330, %vm331
    %v333 = vsel %vm332, %v325, %v329
    %v334 = vand.u32 2147483647, %v324
    %vm335 = vcmp.eq.f32.partialorder %v334, 8.507059e+37
    %v336 = vand.u32 %v324, 2147483648
    %v337 = vor.u32 1.1754944e-38, %v336
    %v338 = vsel %vm335, %v337, %v333
    %v339 = vmul.f32 1.0, %v338
    %v340 = vmul.f32 %v339, 2.0
    %v341 = vsub.f32 %v340, 1.0
    %v342 = vmul.f32 %v339, %v283
    %344 = vrot.lane.b32.xlu0 %v341, 64
    %v345 = vpop.permute.xlu0 %344
    %v347 = vmul.f32 %v339, %v345
    %349 = vrot.lane.b32.xlu0 %v347, 32
    %v350 = vpop.permute.xlu0 %349
    %v352 = vadd.f32 %v342, %v350
    %v353 = vtanh.pop %v352
    %355 = vrot.lane.b32.xlu0 %v353, 64
    %v356 = vpop.permute.xlu0 %355
    %v358 = vmul.f32 %v339, %v356
    %v359 = vrot.slane %v80, 4
    %v361 = vrot.slane %v83, 3
    %v363 = vsel %vm88, %v359, %v361
    %365 = vrot.lane.b32.xlu0 %v358, 32
    %v366 = vpop.permute.xlu0 %365
    %v367 = vsel %vm90, %v366, 0
    %369 = vmatpush.msra.mxu0 0.0
    %370 = vmatpush.msra.mxu0 0.0
    %371 = vmatpush.msra.mxu0 0.0
    %372 = vmatpush.msra.mxu0 0.0
    %373 = vmatpush.msra.mxu0 0.0
    %374 = vmatpush.msra.mxu0 0.0
    %375 = vmatpush.msra.mxu0 0.0
    %376 = vmatpush.msra.mxu0 0.0
    %377 = vmatpush.msra.mxu0 0.0
    %378 = vmatpush.msra.mxu0 0.0
    %379 = vmatpush.msra.mxu0 0.0
    %380 = vmatpush.msra.mxu0 0.0
    %381 = vmatpush.msra.mxu0 %v48
    %382 = vmatpush.msra.mxu0 %v47
    %383 = vmatpush.msra.mxu0 %v46
    %384 = vmatpush.msra.mxu0 %v45
    %385 = vmatmul.f32.gmra.mxu0 %v367
    %v386 = vpop.f32.mrf.mxu0
    %v387 = vadd.f32 0.0, %v386
    %388 = vdwg.mxu0
    %v389 = vadd.f32 %v363, %v387
    %v390 = vxor.u32 %v389, 2147483648
    %v391 = vmul.f32 %v390, 1.442695
    %v392 = vpow.pop %v391
    %v393 = vadd.f32 %v392, 1.0
    %v394 = vrcp.pop %v393
    %v395 = vmul.f32 %v393, %v394
    %v396 = vsub.f32 1.0, %v395
    %v397 = vmul.f32 %v394, %v396
    %v398 = vadd.f32 %v394, %v397
    %vm399 = vweird.f32 %v393
    %vm400 = vweird.f32 %v394
    %vm401 = vmor %vm399, %vm400
    %v402 = vsel %vm401, %v394, %v398
    %v403 = vand.u32 2147483647, %v393
    %vm404 = vcmp.eq.f32.partialorder %v403, 8.507059e+37
    %v405 = vand.u32 %v393, 2147483648
    %v406 = vor.u32 1.1754944e-38, %v405
    %v407 = vsel %vm404, %v406, %v402
    %v408 = vmul.f32 1.0, %v407
    %v409 = vmul.f32 %v408, 2.0
    %v410 = vsub.f32 %v409, 1.0
    %v411 = vmul.f32 %v408, %v352
    %413 = vrot.lane.b32.xlu0 %v410, 64
    %v414 = vpop.permute.xlu0 %413
    %v416 = vmul.f32 %v408, %v414
    %418 = vrot.lane.b32.xlu0 %v416, 32
    %v419 = vpop.permute.xlu0 %418
    %v421 = vadd.f32 %v411, %v419
    %v422 = vtanh.pop %v421
    %424 = vrot.lane.b32.xlu0 %v422, 64
    %v425 = vpop.permute.xlu0 %424
    %v427 = vmul.f32 %v408, %v425
    %v428 = vrot.slane %v80, 5
    %v430 = vrot.slane %v83, 4
    %v432 = vsel %vm88, %v428, %v430
    %434 = vrot.lane.b32.xlu0 %v427, 32
    %v435 = vpop.permute.xlu0 %434
    %v436 = vsel %vm90, %v435, 0
    %438 = vmatpush.msra.mxu0 0.0
    %439 = vmatpush.msra.mxu0 0.0
    %440 = vmatpush.msra.mxu0 0.0
    %441 = vmatpush.msra.mxu0 0.0
    %442 = vmatpush.msra.mxu0 0.0
    %443 = vmatpush.msra.mxu0 0.0
    %444 = vmatpush.msra.mxu0 0.0
    %445 = vmatpush.msra.mxu0 0.0
    %446 = vmatpush.msra.mxu0 0.0
    %447 = vmatpush.msra.mxu0 0.0
    %448 = vmatpush.msra.mxu0 0.0
    %449 = vmatpush.msra.mxu0 0.0
    %450 = vmatpush.msra.mxu0 %v48
    %451 = vmatpush.msra.mxu0 %v47
    %452 = vmatpush.msra.mxu0 %v46
    %453 = vmatpush.msra.mxu0 %v45
    %454 = vmatmul.f32.gmra.mxu0 %v436
    %v455 = vpop.f32.mrf.mxu0
    %v456 = vadd.f32 0.0, %v455
    %457 = vdwg.mxu0
    %v458 = vadd.f32 %v432, %v456
    %v459 = vxor.u32 %v458, 2147483648
    %v460 = vmul.f32 %v459, 1.442695
    %v461 = vpow.pop %v460
    %v462 = vadd.f32 %v461, 1.0
    %v463 = vrcp.pop %v462
    %v464 = vmul.f32 %v462, %v463
    %v465 = vsub.f32 1.0, %v464
    %v466 = vmul.f32 %v463, %v465
    %v467 = vadd.f32 %v463, %v466
    %vm468 = vweird.f32 %v462
    %vm469 = vweird.f32 %v463
    %vm470 = vmor %vm468, %vm469
    %v471 = vsel %vm470, %v463, %v467
    %v472 = vand.u32 2147483647, %v462
    %vm473 = vcmp.eq.f32.partialorder %v472, 8.507059e+37
    %v474 = vand.u32 %v462, 2147483648
    %v475 = vor.u32 1.1754944e-38, %v474
    %v476 = vsel %vm473, %v475, %v471
    %v477 = vmul.f32 1.0, %v476
    %v478 = vmul.f32 %v477, 2.0
    %v479 = vsub.f32 %v478, 1.0
    %v480 = vmul.f32 %v477, %v421
    %482 = vrot.lane.b32.xlu0 %v479, 64
    %v483 = vpop.permute.xlu0 %482
    %v485 = vmul.f32 %v477, %v483
    %487 = vrot.lane.b32.xlu0 %v485, 32
    %v488 = vpop.permute.xlu0 %487
    %v490 = vadd.f32 %v480, %v488
    %v491 = vtanh.pop %v490
    %493 = vrot.lane.b32.xlu0 %v491, 64
    %v494 = vpop.permute.xlu0 %493
    %v496 = vmul.f32 %v477, %v494
    %v497 = vrot.slane %v80, 6
    %v499 = vrot.slane %v83, 5
    %v501 = vsel %vm88, %v497, %v499
    %503 = vrot.lane.b32.xlu0 %v496, 32
    %v504 = vpop.permute.xlu0 %503
    %v505 = vsel %vm90, %v504, 0
    %507 = vmatpush.msra.mxu0 0.0
    %508 = vmatpush.msra.mxu0 0.0
    %509 = vmatpush.msra.mxu0 0.0
    %510 = vmatpush.msra.mxu0 0.0
    %511 = vmatpush.msra.mxu0 0.0
    %512 = vmatpush.msra.mxu0 0.0
    %513 = vmatpush.msra.mxu0 0.0
    %514 = vmatpush.msra.mxu0 0.0
    %515 = vmatpush.msra.mxu0 0.0
    %516 = vmatpush.msra.mxu0 0.0
    %517 = vmatpush.msra.mxu0 0.0
    %518 = vmatpush.msra.mxu0 0.0
    %519 = vmatpush.msra.mxu0 %v48
    %520 = vmatpush.msra.mxu0 %v47
    %521 = vmatpush.msra.mxu0 %v46
    %522 = vmatpush.msra.mxu0 %v45
    %523 = vmatmul.f32.gmra.mxu0 %v505
    %v524 = vpop.f32.mrf.mxu0
    %v525 = vadd.f32 0.0, %v524
    %526 = vdwg.mxu0
    %v527 = vadd.f32 %v501, %v525
    %v528 = vxor.u32 %v527, 2147483648
    %v529 = vmul.f32 %v528, 1.442695
    %v530 = vpow.pop %v529
    %v531 = vadd.f32 %v530, 1.0
    %v532 = vrcp.pop %v531
    %v533 = vmul.f32 %v531, %v532
    %v534 = vsub.f32 1.0, %v533
    %v535 = vmul.f32 %v532, %v534
    %v536 = vadd.f32 %v532, %v535
    %vm537 = vweird.f32 %v531
    %vm538 = vweird.f32 %v532
    %vm539 = vmor %vm537, %vm538
    %v540 = vsel %vm539, %v532, %v536
    %v541 = vand.u32 2147483647, %v531
    %vm542 = vcmp.eq.f32.partialorder %v541, 8.507059e+37
    %v543 = vand.u32 %v531, 2147483648
    %v544 = vor.u32 1.1754944e-38, %v543
    %v545 = vsel %vm542, %v544, %v540
    %v546 = vmul.f32 1.0, %v545
    %v547 = vmul.f32 %v546, 2.0
    %v548 = vsub.f32 %v547, 1.0
    %v549 = vmul.f32 %v546, %v490
    %551 = vrot.lane.b32.xlu0 %v548, 64
    %v552 = vpop.permute.xlu0 %551
    %v554 = vmul.f32 %v546, %v552
    %556 = vrot.lane.b32.xlu0 %v554, 32
    %v557 = vpop.permute.xlu0 %556
    %v559 = vadd.f32 %v549, %v557
    %v560 = vtanh.pop %v559
    %562 = vrot.lane.b32.xlu0 %v560, 64
    %v563 = vpop.permute.xlu0 %562
    %v565 = vmul.f32 %v546, %v563
    %v566 = vrot.slane %v80, 7
    %v568 = vrot.slane %v83, 6
    %v570 = vsel %vm88, %v566, %v568
    %572 = vrot.lane.b32.xlu0 %v565, 32
    %v573 = vpop.permute.xlu0 %572
    %v574 = vsel %vm90, %v573, 0
    %576 = vmatpush.msra.mxu0 0.0
    %577 = vmatpush.msra.mxu0 0.0
    %578 = vmatpush.msra.mxu0 0.0
    %579 = vmatpush.msra.mxu0 0.0
    %580 = vmatpush.msra.mxu0 0.0
    %581 = vmatpush.msra.mxu0 0.0
    %582 = vmatpush.msra.mxu0 0.0
    %583 = vmatpush.msra.mxu0 0.0
    %584 = vmatpush.msra.mxu0 0.0
    %585 = vmatpush.msra.mxu0 0.0
    %586 = vmatpush.msra.mxu0 0.0
    %587 = vmatpush.msra.mxu0 0.0
    %588 = vmatpush.msra.mxu0 %v48
    %589 = vmatpush.msra.mxu0 %v47
    %590 = vmatpush.msra.mxu0 %v46
    %591 = vmatpush.msra.mxu0 %v45
    %592 = vmatmul.f32.gmra.mxu0 %v574
    %v593 = vpop.f32.mrf.mxu0
    %v594 = vadd.f32 0.0, %v593
    %595 = vdwg.mxu0
    %v596 = vadd.f32 %v570, %v594
    %v597 = vxor.u32 %v596, 2147483648
    %v598 = vmul.f32 %v597, 1.442695
    %v599 = vpow.pop %v598
    %v600 = vadd.f32 %v599, 1.0
    %v601 = vrcp.pop %v600
    %v602 = vmul.f32 %v600, %v601
    %v603 = vsub.f32 1.0, %v602
    %v604 = vmul.f32 %v601, %v603
    %v605 = vadd.f32 %v601, %v604
    %vm606 = vweird.f32 %v600
    %vm607 = vweird.f32 %v601
    %vm608 = vmor %vm606, %vm607
    %v609 = vsel %vm608, %v601, %v605
    %v610 = vand.u32 2147483647, %v600
    %vm611 = vcmp.eq.f32.partialorder %v610, 8.507059e+37
    %v612 = vand.u32 %v600, 2147483648
    %v613 = vor.u32 1.1754944e-38, %v612
    %v614 = vsel %vm611, %v613, %v609
    %v615 = vmul.f32 1.0, %v614
    %v616 = vmul.f32 %v615, 2.0
    %v617 = vsub.f32 %v616, 1.0
    %v618 = vmul.f32 %v615, %v559
    %620 = vrot.lane.b32.xlu0 %v617, 64
    %v621 = vpop.permute.xlu0 %620
    %v623 = vmul.f32 %v615, %v621
    %625 = vrot.lane.b32.xlu0 %v623, 32
    %v626 = vpop.permute.xlu0 %625
    %v628 = vadd.f32 %v618, %v626
    %v629 = vtanh.pop %v628
    %631 = vrot.lane.b32.xlu0 %v629, 64
    %v632 = vpop.permute.xlu0 %631
    %v634 = vmul.f32 %v615, %v632
    %v635 = vperm.slane %v50, 0
    %637 = vrot.lane.b32.xlu0 %v635, 96
    %v638 = vpop.permute.xlu0 %637
    %v640 = vmul.f32 %v634, %v638
    %642 = vrot.lane.b32.xlu0 %v640, 32
    %v643 = vpop.permute.xlu0 %642
    %vm645 = vcmask 254976
    %v646 = vsel %vm645, %v643, 0.0
    %647 = vadd.xlane.f32.xlu0 %v646
    %v648 = vpop.xlane.xlu0 %647
    %v649 = vperm.slane %v51, 0
    %v650 = vadd.f32 %v648, %v649
    %vm651 = vcmask 1024
    %652 = vst.msk [vmem:[%s2] sm:$0x3] %vm651, %v650
    // Predicated region
    $region18: #{shallow_lstm_forward.1} parent=1 // pred_check
      _
    $region19: #{shallow_lstm_forward.1} parent=1 // pred_check_branch
      %654 = sbr.rel (0) target = $region21
    $region20: #{shallow_lstm_forward.1} parent=1 // pred_region
      _
    $region21: #{shallow_lstm_forward.1} parent=1 // pred_fallthru
      _
    // Predicated region
    $region22: #{shallow_lstm_forward.1} parent=1 // pred_check
      _
    $region23: #{shallow_lstm_forward.1} parent=1 // pred_check_branch
      %656 = sbr.rel (0) target = $region25
    $region24: #{shallow_lstm_forward.1} parent=1 // pred_region
      _
    $region25: #{shallow_lstm_forward.1} parent=1 // pred_fallthru
      _
    %657 = vsyncpa [#allocation3], 1
    %658 = vsyncpa [#allocation5], 1

</llo_original>
